<compile_context>
chip_gen: v5e
topology: v5e:2x2
jax: 0.10.0
libtpu: 0.0.40
codegen_flags: <defaults>
</compile_context>

<pallas_src>
import jax
import jax.numpy as jnp
from jax.experimental import pallas as pl
from jax.experimental.pallas import tpu as pltpu

EPS = 1e-5      # PyTorch LayerNorm default
LANE = 128      # TPU lane width


def _round_up(n, m):
    return ((n + m - 1) // m) * m


# ---------------------------------------------------------------------------
# Fused kernel
# ---------------------------------------------------------------------------
def _ln_f32(y, d_real, gamma, beta):
    """One-pass LayerNorm in f32. Padded lanes are exactly zero, so summing over the
    padded width and dividing by the real feature count gives exact statistics."""
    inv_d = 1.0 / float(d_real)
    s = jnp.sum(y, axis=-1, keepdims=True)
    s2 = jnp.sum(y * y, axis=-1, keepdims=True)
    mean = s * inv_d
    var = s2 * inv_d - mean * mean
    return (y - mean) * jax.lax.rsqrt(var + EPS) * gamma + beta


def make_fused_kernel(normalize_input, d0_real, layer_kinds):
    """layer_kinds: list of ("hidden", dout_real) / ("last", dout_real)."""

    def kernel(*refs):
        idx = 0
        x = refs[idx][...].astype(jnp.float32)
        idx += 1

        if normalize_input:
            g = refs[idx][...]
            b = refs[idx + 1][...]
            idx += 2
            x = _ln_f32(x, d0_real, g, b)          # input LayerNorm (fused)

        for kind, dout in layer_kinds:
            w_ref = refs[idx]
            b_ref = refs[idx + 1]
            idx += 2
            # bf16 MXU matmul, f32 accumulation; bias add in f32.
            y = jnp.dot(x.astype(jnp.bfloat16), w_ref[...],
                        preferred_element_type=jnp.float32)
            y = y + b_ref[...]
            if kind == "hidden":
                g_ref = refs[idx]
                beta_ref = refs[idx + 1]
                idx += 2
                y = _ln_f32(y, dout, g_ref[...], beta_ref[...])
                y = jnp.maximum(y, 0.0)            # ReLU
            x = y

        out_ref = refs[idx]
        out_ref[...] = x.astype(out_ref.dtype)

    return kernel


# ---------------------------------------------------------------------------
# Parameter init (canonical f32, unpadded — mirrors PyTorch defaults)
# ---------------------------------------------------------------------------
def init_params(key, dimensions, normalize_input):
    params = {"dimensions": tuple(dimensions),
              "normalize_input": normalize_input,
              "layers": []}
    if normalize_input:
        params["input_ln"] = (jnp.ones((dimensions[0],), jnp.float32),
                              jnp.zeros((dimensions[0],), jnp.float32))
    n_layers = len(dimensions) - 1
    for i, (din, dout) in enumerate(zip(dimensions, dimensions[1:])):
        key, kw, kb = jax.random.split(key, 3)
        bound = float(din) ** -0.5               # nn.Linear init range
        w = jax.random.uniform(kw, (din, dout), jnp.float32, -bound, bound)
        b = jax.random.uniform(kb, (dout,), jnp.float32, -bound, bound)
        if i != n_layers - 1:
            params["layers"].append(("hidden", w, b,
                                     jnp.ones((dout,), jnp.float32),
                                     jnp.zeros((dout,), jnp.float32)))
        else:
            params["layers"].append(("last", w, b))
    return params


def _pad_row(v, dpad):
    out = jnp.zeros((1, dpad), jnp.float32)
    return out.at[0, : v.shape[0]].set(v.astype(jnp.float32))


def pack_params(params):
    """Pad feature dims to 128 and lay params out for the fused kernel.
    Weights -> bf16 [Din_pad, Dout_pad] (zero padding); bias/gamma/beta -> f32 [1, Dout_pad]
    with zero padding so padded lanes stay exactly zero through LN/ReLU."""
    dims = params["dimensions"]
    dims_pad = tuple(_round_up(d, LANE) for d in dims)
    packed = {"dims": dims, "dims_pad": dims_pad,
              "normalize_input": params["normalize_input"],
              "layer_kinds": [], "tensors": []}
    if params["normalize_input"]:
        g, b = params["input_ln"]
        packed["tensors"] += [_pad_row(g, dims_pad[0]), _pad_row(b, dims_pad[0])]
    for layer in params["layers"]:
        kind, w, b = layer[0], layer[1], layer[2]
        din, dout = w.shape
        dinp, doutp = _round_up(din, LANE), _round_up(dout, LANE)
        wpad = jnp.zeros((dinp, doutp), jnp.bfloat16)
        wpad = wpad.at[:din, :dout].set(w.astype(jnp.bfloat16))
        packed["tensors"] += [wpad, _pad_row(b, doutp)]
        if kind == "hidden":
            packed["tensors"] += [_pad_row(layer[3], doutp), _pad_row(layer[4], doutp)]
        packed["layer_kinds"].append((kind, dout))
    return packed


# ---------------------------------------------------------------------------
# Forward: one fused pallas_call, batch-tiled grid, weights resident in VMEM
# ---------------------------------------------------------------------------
def dnn_block_forward(packed, x, batch_tile=256):
    B, D0 = x.shape
    dims, dims_pad = packed["dims"], packed["dims_pad"]
    assert D0 == dims[0]
    d0p, dlp = dims_pad[0], dims_pad[-1]
    dl = dims[-1]

    tb = batch_tile if B >= batch_tile else _round_up(max(B, 1), 8)
    bp = _round_up(B, tb)
    xp = jnp.zeros((bp, d0p), jnp.float32).at[:B, :D0].set(x.astype(jnp.float32))

    kernel = make_fused_kernel(packed["normalize_input"], dims[0], packed["layer_kinds"])

    x_spec = pl.BlockSpec((tb, d0p), lambda i: (i, 0))
    param_specs = [pl.BlockSpec(t.shape, lambda i: (0, 0)) for t in packed["tensors"]]
    out_spec = pl.BlockSpec((tb, dlp), lambda i: (i, 0))

    out_padded = pl.pallas_call(
        kernel,
        out_shape=jax.ShapeDtypeStruct((bp, dlp), jnp.float32),
        grid_spec=pltpu.PrefetchScalarGridSpec(
            num_scalar_prefetch=0,
            grid=(bp // tb,),
            in_specs=[x_spec] + param_specs,
            out_specs=out_spec,
        ),
        compiler_params=pltpu.CompilerParams(
            dimension_semantics=("parallel",),      # batch axis -> both TCs on v7x
            vmem_limit_bytes=32 * 1024 * 1024,      # safe on v5e/v6e/v7x; tiny footprint
        ),
    )(xp, *packed["tensors"])

    return out_padded[:B, :dl]


# ---------------------------------------------------------------------------
# Pure-JAX references
# ---------------------------------------------------------------------------
def _ref_forward_module(params, x):
    """f32 reference with the PyTorch module's exact semantics."""
    def ln(y, g, b):
        m = jnp.mean(y, axis=-1, keepdims=True)
        v = jnp.mean((y - m) ** 2, axis=-1, keepdims=True)
        return (y - m) / jnp.sqrt(v + EPS) * g + b

    if params["normalize_input"]:
        g, b = params["input_ln"]
        x = ln(x, g, b)
    for layer in params["layers"]:
        if layer[0] == "hidden":
            _, w, b, g, beta = layer
            x = jnp.maximum(ln(x @ w + b, g, beta), 0.0)
        else:
            _, w, b = layer
            x = x @ w + b
    return x


def _ref_forward_kernel_numerics(params, x):
    """Reference that mirrors the kernel numerics (bf16 matmul inputs, one-pass LN)."""
    def ln(y, g, b):
        m = jnp.mean(y, axis=-1, keepdims=True)
        m2 = jnp.mean(y * y, axis=-1, keepdims=True)
        return (y - m) * jax.lax.rsqrt(m2 - m * m + EPS) * g + b

    x = x.astype(jnp.float32)
    if params["normalize_input"]:
        g, b = params["input_ln"]
        x = ln(x, g, b)
    for layer in params["layers"]:
        w = layer[1].astype(jnp.bfloat16)
        b = layer[2]
        y = jnp.dot(x.astype(jnp.bfloat16), w, preferred_element_type=jnp.float32) + b
        if layer[0] == "hidden":
            y = jnp.maximum(ln(y, layer[3], layer[4]), 0.0)
        x = y
    return x


if __name__ == "__main__":
    dimensions = [32, 64, 48, 16]   # input_dim, hidden..., output_dim
    batch = 8
    key = jax.random.PRNGKey(0)
    key, kx, kp = jax.random.split(key, 3)

    x = jax.random.normal(kx, (batch, dimensions[0]), jnp.float32)
    params = init_params(kp, dimensions, normalize_input=True)
    packed = pack_params(params)

    out = dnn_block_forward(packed, x)
    out = jax.block_until_ready(out)
    assert out.shape == (batch, dimensions[-1])

    # Tight check vs a reference that uses the same bf16-matmul / one-pass-LN numerics.
    ref_exact = _ref_forward_kernel_numerics(params, x)
    assert jnp.allclose(out, ref_exact, atol=1e-4, rtol=1e-4), "mismatch vs bf16 reference"

    # Loose check vs the pure-f32 module semantics (bf16 MXU rounding ~1e-2).
    ref_f32 = _ref_forward_module(params, x)
    assert jnp.allclose(out, ref_f32, atol=5e-2, rtol=5e-2), "mismatch vs f32 reference"

    print("KERNEL_OK")
</pallas_src>

<mosaic_0001>
module attributes {stable_mosaic.version = 11 : i64} {
  func.func @kernel(%arg0: i32, %arg1: memref<8x128xf32, #tpu.memory_space<vmem>>, %arg2: memref<1x128xf32, #tpu.memory_space<vmem>>, %arg3: memref<1x128xf32, #tpu.memory_space<vmem>>, %arg4: memref<128x128xbf16, #tpu.memory_space<vmem>>, %arg5: memref<1x128xf32, #tpu.memory_space<vmem>>, %arg6: memref<1x128xf32, #tpu.memory_space<vmem>>, %arg7: memref<1x128xf32, #tpu.memory_space<vmem>>, %arg8: memref<128x128xbf16, #tpu.memory_space<vmem>>, %arg9: memref<1x128xf32, #tpu.memory_space<vmem>>, %arg10: memref<1x128xf32, #tpu.memory_space<vmem>>, %arg11: memref<1x128xf32, #tpu.memory_space<vmem>>, %arg12: memref<128x128xbf16, #tpu.memory_space<vmem>>, %arg13: memref<1x128xf32, #tpu.memory_space<vmem>>, %arg14: memref<8x128xf32, #tpu.memory_space<vmem>>) attributes {dimension_semantics = [#tpu.dimension_semantics<parallel>], iteration_bounds = array<i64: 1>, scalar_prefetch = 0 : i64, scratch_operands = 0 : i64, tpu.core_type = #tpu.core_type<tc>, window_params = [{transform_indices = @transform_0, window_bounds = array<i64: 8, 128>}, {pipeline_mode = #tpu.pipeline_mode<synchronous>, transform_indices = @transform_1, window_bounds = array<i64: 1, 128>}, {pipeline_mode = #tpu.pipeline_mode<synchronous>, transform_indices = @transform_2, window_bounds = array<i64: 1, 128>}, {pipeline_mode = #tpu.pipeline_mode<synchronous>, transform_indices = @transform_3, window_bounds = array<i64: 128, 128>}, {pipeline_mode = #tpu.pipeline_mode<synchronous>, transform_indices = @transform_4, window_bounds = array<i64: 1, 128>}, {pipeline_mode = #tpu.pipeline_mode<synchronous>, transform_indices = @transform_5, window_bounds = array<i64: 1, 128>}, {pipeline_mode = #tpu.pipeline_mode<synchronous>, transform_indices = @transform_6, window_bounds = array<i64: 1, 128>}, {pipeline_mode = #tpu.pipeline_mode<synchronous>, transform_indices = @transform_7, window_bounds = array<i64: 128, 128>}, {pipeline_mode = #tpu.pipeline_mode<synchronous>, transform_indices = @transform_8, window_bounds = array<i64: 1, 128>}, {pipeline_mode = #tpu.pipeline_mode<synchronous>, transform_indices = @transform_9, window_bounds = array<i64: 1, 128>}, {pipeline_mode = #tpu.pipeline_mode<synchronous>, transform_indices = @transform_10, window_bounds = array<i64: 1, 128>}, {pipeline_mode = #tpu.pipeline_mode<synchronous>, transform_indices = @transform_11, window_bounds = array<i64: 128, 128>}, {pipeline_mode = #tpu.pipeline_mode<synchronous>, transform_indices = @transform_12, window_bounds = array<i64: 1, 128>}, {transform_indices = @transform_13, window_bounds = array<i64: 8, 128>}]} {
    %c0 = arith.constant 0 : index
    %c0_0 = arith.constant 0 : index
    %0 = vector.load %arg1[%c0, %c0_0] : memref<8x128xf32, #tpu.memory_space<vmem>>, vector<8x128xf32>
    %c0_1 = arith.constant 0 : index
    %c0_2 = arith.constant 0 : index
    %1 = vector.load %arg2[%c0_1, %c0_2] : memref<1x128xf32, #tpu.memory_space<vmem>>, vector<1x128xf32>
    %c0_3 = arith.constant 0 : index
    %c0_4 = arith.constant 0 : index
    %2 = vector.load %arg3[%c0_3, %c0_4] : memref<1x128xf32, #tpu.memory_space<vmem>>, vector<1x128xf32>
    %cst = arith.constant dense<0.000000e+00> : vector<8xf32>
    %3 = vector.multi_reduction <add>, %0, %cst [1] : vector<8x128xf32> to vector<8xf32>
    %4 = vector.shape_cast %3 : vector<8xf32> to vector<8x1xf32>
    %5 = arith.mulf %0, %0 : vector<8x128xf32>
    %cst_5 = arith.constant dense<0.000000e+00> : vector<8xf32>
    %6 = vector.multi_reduction <add>, %5, %cst_5 [1] : vector<8x128xf32> to vector<8xf32>
    %7 = vector.shape_cast %6 : vector<8xf32> to vector<8x1xf32>
    %cst_6 = arith.constant 3.125000e-02 : f32
    %8 = vector.broadcast %cst_6 : f32 to vector<8x1xf32>
    %9 = arith.mulf %4, %8 : vector<8x1xf32>
    %cst_7 = arith.constant 3.125000e-02 : f32
    %10 = vector.broadcast %cst_7 : f32 to vector<8x1xf32>
    %11 = arith.mulf %7, %10 : vector<8x1xf32>
    %12 = arith.mulf %9, %9 : vector<8x1xf32>
    %13 = arith.subf %11, %12 : vector<8x1xf32>
    %14 = vector.broadcast %9 : vector<8x1xf32> to vector<8x128xf32>
    %15 = arith.subf %0, %14 : vector<8x128xf32>
    %cst_8 = arith.constant 9.99999974E-6 : f32
    %16 = vector.broadcast %cst_8 : f32 to vector<8x1xf32>
    %17 = arith.addf %13, %16 : vector<8x1xf32>
    %18 = math.rsqrt %17 : vector<8x1xf32>
    %19 = vector.broadcast %18 : vector<8x1xf32> to vector<8x128xf32>
    %20 = arith.mulf %15, %19 : vector<8x128xf32>
    %21 = vector.broadcast %1 : vector<1x128xf32> to vector<8x128xf32>
    %22 = arith.mulf %20, %21 : vector<8x128xf32>
    %23 = vector.broadcast %2 : vector<1x128xf32> to vector<8x128xf32>
    %24 = arith.addf %22, %23 : vector<8x128xf32>
    %25 = arith.truncf %24 : vector<8x128xf32> to vector<8x128xbf16>
    %c0_9 = arith.constant 0 : index
    %c0_10 = arith.constant 0 : index
    %26 = vector.load %arg4[%c0_9, %c0_10] : memref<128x128xbf16, #tpu.memory_space<vmem>>, vector<128x128xbf16>
    %cst_11 = arith.constant dense<0.000000e+00> : vector<8x128xf32>
    %27 = tpu.matmul %25, %26, %cst_11 {dimension_numbers = #tpu.dot_dimension_numbers<[1], [0], [0], [1], [0, 0, 1, 1], [], []>} : vector<8x128xbf16>, vector<128x128xbf16>, vector<8x128xf32> -> vector<8x128xf32>
    %c0_12 = arith.constant 0 : index
    %c0_13 = arith.constant 0 : index
    %28 = vector.load %arg5[%c0_12, %c0_13] : memref<1x128xf32, #tpu.memory_space<vmem>>, vector<1x128xf32>
    %29 = vector.broadcast %28 : vector<1x128xf32> to vector<8x128xf32>
    %30 = arith.addf %27, %29 : vector<8x128xf32>
    %c0_14 = arith.constant 0 : index
    %c0_15 = arith.constant 0 : index
    %31 = vector.load %arg6[%c0_14, %c0_15] : memref<1x128xf32, #tpu.memory_space<vmem>>, vector<1x128xf32>
    %c0_16 = arith.constant 0 : index
    %c0_17 = arith.constant 0 : index
    %32 = vector.load %arg7[%c0_16, %c0_17] : memref<1x128xf32, #tpu.memory_space<vmem>>, vector<1x128xf32>
    %cst_18 = arith.constant dense<0.000000e+00> : vector<8xf32>
    %33 = vector.multi_reduction <add>, %30, %cst_18 [1] : vector<8x128xf32> to vector<8xf32>
    %34 = vector.shape_cast %33 : vector<8xf32> to vector<8x1xf32>
    %35 = arith.mulf %30, %30 : vector<8x128xf32>
    %cst_19 = arith.constant dense<0.000000e+00> : vector<8xf32>
    %36 = vector.multi_reduction <add>, %35, %cst_19 [1] : vector<8x128xf32> to vector<8xf32>
    %37 = vector.shape_cast %36 : vector<8xf32> to vector<8x1xf32>
    %cst_20 = arith.constant 1.562500e-02 : f32
    %38 = vector.broadcast %cst_20 : f32 to vector<8x1xf32>
    %39 = arith.mulf %34, %38 : vector<8x1xf32>
    %cst_21 = arith.constant 1.562500e-02 : f32
    %40 = vector.broadcast %cst_21 : f32 to vector<8x1xf32>
    %41 = arith.mulf %37, %40 : vector<8x1xf32>
    %42 = arith.mulf %39, %39 : vector<8x1xf32>
    %43 = arith.subf %41, %42 : vector<8x1xf32>
    %44 = vector.broadcast %39 : vector<8x1xf32> to vector<8x128xf32>
    %45 = arith.subf %30, %44 : vector<8x128xf32>
    %cst_22 = arith.constant 9.99999974E-6 : f32
    %46 = vector.broadcast %cst_22 : f32 to vector<8x1xf32>
    %47 = arith.addf %43, %46 : vector<8x1xf32>
    %48 = math.rsqrt %47 : vector<8x1xf32>
    %49 = vector.broadcast %48 : vector<8x1xf32> to vector<8x128xf32>
    %50 = arith.mulf %45, %49 : vector<8x128xf32>
    %51 = vector.broadcast %31 : vector<1x128xf32> to vector<8x128xf32>
    %52 = arith.mulf %50, %51 : vector<8x128xf32>
    %53 = vector.broadcast %32 : vector<1x128xf32> to vector<8x128xf32>
    %54 = arith.addf %52, %53 : vector<8x128xf32>
    %cst_23 = arith.constant 0.000000e+00 : f32
    %55 = vector.broadcast %cst_23 : f32 to vector<8x128xf32>
    %56 = arith.maximumf %54, %55 : vector<8x128xf32>
    %57 = arith.truncf %56 : vector<8x128xf32> to vector<8x128xbf16>
    %c0_24 = arith.constant 0 : index
    %c0_25 = arith.constant 0 : index
    %58 = vector.load %arg8[%c0_24, %c0_25] : memref<128x128xbf16, #tpu.memory_space<vmem>>, vector<128x128xbf16>
    %cst_26 = arith.constant dense<0.000000e+00> : vector<8x128xf32>
    %59 = tpu.matmul %57, %58, %cst_26 {dimension_numbers = #tpu.dot_dimension_numbers<[1], [0], [0], [1], [0, 0, 1, 1], [], []>} : vector<8x128xbf16>, vector<128x128xbf16>, vector<8x128xf32> -> vector<8x128xf32>
    %c0_27 = arith.constant 0 : index
    %c0_28 = arith.constant 0 : index
    %60 = vector.load %arg9[%c0_27, %c0_28] : memref<1x128xf32, #tpu.memory_space<vmem>>, vector<1x128xf32>
    %61 = vector.broadcast %60 : vector<1x128xf32> to vector<8x128xf32>
    %62 = arith.addf %59, %61 : vector<8x128xf32>
    %c0_29 = arith.constant 0 : index
    %c0_30 = arith.constant 0 : index
    %63 = vector.load %arg10[%c0_29, %c0_30] : memref<1x128xf32, #tpu.memory_space<vmem>>, vector<1x128xf32>
    %c0_31 = arith.constant 0 : index
    %c0_32 = arith.constant 0 : index
    %64 = vector.load %arg11[%c0_31, %c0_32] : memref<1x128xf32, #tpu.memory_space<vmem>>, vector<1x128xf32>
    %cst_33 = arith.constant dense<0.000000e+00> : vector<8xf32>
    %65 = vector.multi_reduction <add>, %62, %cst_33 [1] : vector<8x128xf32> to vector<8xf32>
    %66 = vector.shape_cast %65 : vector<8xf32> to vector<8x1xf32>
    %67 = arith.mulf %62, %62 : vector<8x128xf32>
    %cst_34 = arith.constant dense<0.000000e+00> : vector<8xf32>
    %68 = vector.multi_reduction <add>, %67, %cst_34 [1] : vector<8x128xf32> to vector<8xf32>
    %69 = vector.shape_cast %68 : vector<8xf32> to vector<8x1xf32>
    %cst_35 = arith.constant 0.020833334 : f32
    %70 = vector.broadcast %cst_35 : f32 to vector<8x1xf32>
    %71 = arith.mulf %66, %70 : vector<8x1xf32>
    %cst_36 = arith.constant 0.020833334 : f32
    %72 = vector.broadcast %cst_36 : f32 to vector<8x1xf32>
    %73 = arith.mulf %69, %72 : vector<8x1xf32>
    %74 = arith.mulf %71, %71 : vector<8x1xf32>
    %75 = arith.subf %73, %74 : vector<8x1xf32>
    %76 = vector.broadcast %71 : vector<8x1xf32> to vector<8x128xf32>
    %77 = arith.subf %62, %76 : vector<8x128xf32>
    %cst_37 = arith.constant 9.99999974E-6 : f32
    %78 = vector.broadcast %cst_37 : f32 to vector<8x1xf32>
    %79 = arith.addf %75, %78 : vector<8x1xf32>
    %80 = math.rsqrt %79 : vector<8x1xf32>
    %81 = vector.broadcast %80 : vector<8x1xf32> to vector<8x128xf32>
    %82 = arith.mulf %77, %81 : vector<8x128xf32>
    %83 = vector.broadcast %63 : vector<1x128xf32> to vector<8x128xf32>
    %84 = arith.mulf %82, %83 : vector<8x128xf32>
    %85 = vector.broadcast %64 : vector<1x128xf32> to vector<8x128xf32>
    %86 = arith.addf %84, %85 : vector<8x128xf32>
    %cst_38 = arith.constant 0.000000e+00 : f32
    %87 = vector.broadcast %cst_38 : f32 to vector<8x128xf32>
    %88 = arith.maximumf %86, %87 : vector<8x128xf32>
    %89 = arith.truncf %88 : vector<8x128xf32> to vector<8x128xbf16>
    %c0_39 = arith.constant 0 : index
    %c0_40 = arith.constant 0 : index
    %90 = vector.load %arg12[%c0_39, %c0_40] : memref<128x128xbf16, #tpu.memory_space<vmem>>, vector<128x128xbf16>
    %cst_41 = arith.constant dense<0.000000e+00> : vector<8x128xf32>
    %91 = tpu.matmul %89, %90, %cst_41 {dimension_numbers = #tpu.dot_dimension_numbers<[1], [0], [0], [1], [0, 0, 1, 1], [], []>} : vector<8x128xbf16>, vector<128x128xbf16>, vector<8x128xf32> -> vector<8x128xf32>
    %c0_42 = arith.constant 0 : index
    %c0_43 = arith.constant 0 : index
    %92 = vector.load %arg13[%c0_42, %c0_43] : memref<1x128xf32, #tpu.memory_space<vmem>>, vector<1x128xf32>
    %93 = vector.broadcast %92 : vector<1x128xf32> to vector<8x128xf32>
    %94 = arith.addf %91, %93 : vector<8x128xf32>
    %c0_44 = arith.constant 0 : index
    %c0_45 = arith.constant 0 : index
    %95 = vector.load %arg14[%c0_44, %c0_45] : memref<8x128xf32, #tpu.memory_space<vmem>>, vector<8x128xf32>
    tpu.vector_store %arg14[%c0_44, %c0_45], %94 {strides = array<i32>} : memref<8x128xf32, #tpu.memory_space<vmem>>, vector<8x128xf32>,
    return
  }
  func.func @transform_0(%arg0: i32) -> (i32, i32) {
    %c0_i32 = arith.constant 0 : i32
    %c0_i32_0 = arith.constant 0 : i32
    return %arg0, %c0_i32 : i32, i32
  }
  func.func @transform_1(%arg0: i32) -> (i32, i32) {
    %c0_i32 = arith.constant 0 : i32
    %c0_i32_0 = arith.constant 0 : i32
    %c0_i32_1 = arith.constant 0 : i32
    return %c0_i32, %c0_i32_0 : i32, i32
  }
  func.func @transform_2(%arg0: i32) -> (i32, i32) {
    %c0_i32 = arith.constant 0 : i32
    %c0_i32_0 = arith.constant 0 : i32
    %c0_i32_1 = arith.constant 0 : i32
    return %c0_i32, %c0_i32_0 : i32, i32
  }
  func.func @transform_3(%arg0: i32) -> (i32, i32) {
    %c0_i32 = arith.constant 0 : i32
    %c0_i32_0 = arith.constant 0 : i32
    %c0_i32_1 = arith.constant 0 : i32
    return %c0_i32, %c0_i32_0 : i32, i32
  }
  func.func @transform_4(%arg0: i32) -> (i32, i32) {
    %c0_i32 = arith.constant 0 : i32
    %c0_i32_0 = arith.constant 0 : i32
    %c0_i32_1 = arith.constant 0 : i32
    return %c0_i32, %c0_i32_0 : i32, i32
  }
  func.func @transform_5(%arg0: i32) -> (i32, i32) {
    %c0_i32 = arith.constant 0 : i32
    %c0_i32_0 = arith.constant 0 : i32
    %c0_i32_1 = arith.constant 0 : i32
    return %c0_i32, %c0_i32_0 : i32, i32
  }
  func.func @transform_6(%arg0: i32) -> (i32, i32) {
    %c0_i32 = arith.constant 0 : i32
    %c0_i32_0 = arith.constant 0 : i32
    %c0_i32_1 = arith.constant 0 : i32
    return %c0_i32, %c0_i32_0 : i32, i32
  }
  func.func @transform_7(%arg0: i32) -> (i32, i32) {
    %c0_i32 = arith.constant 0 : i32
    %c0_i32_0 = arith.constant 0 : i32
    %c0_i32_1 = arith.constant 0 : i32
    return %c0_i32, %c0_i32_0 : i32, i32
  }
  func.func @transform_8(%arg0: i32) -> (i32, i32) {
    %c0_i32 = arith.constant 0 : i32
    %c0_i32_0 = arith.constant 0 : i32
    %c0_i32_1 = arith.constant 0 : i32
    return %c0_i32, %c0_i32_0 : i32, i32
  }
  func.func @transform_9(%arg0: i32) -> (i32, i32) {
    %c0_i32 = arith.constant 0 : i32
    %c0_i32_0 = arith.constant 0 : i32
    %c0_i32_1 = arith.constant 0 : i32
    return %c0_i32, %c0_i32_0 : i32, i32
  }
  func.func @transform_10(%arg0: i32) -> (i32, i32) {
    %c0_i32 = arith.constant 0 : i32
    %c0_i32_0 = arith.constant 0 : i32
    %c0_i32_1 = arith.constant 0 : i32
    return %c0_i32, %c0_i32_0 : i32, i32
  }
  func.func @transform_11(%arg0: i32) -> (i32, i32) {
    %c0_i32 = arith.constant 0 : i32
    %c0_i32_0 = arith.constant 0 : i32
    %c0_i32_1 = arith.constant 0 : i32
    return %c0_i32, %c0_i32_0 : i32, i32
  }
  func.func @transform_12(%arg0: i32) -> (i32, i32) {
    %c0_i32 = arith.constant 0 : i32
    %c0_i32_0 = arith.constant 0 : i32
    %c0_i32_1 = arith.constant 0 : i32
    return %c0_i32, %c0_i32_0 : i32, i32
  }
  func.func @transform_13(%arg0: i32) -> (i32, i32) {
    %c0_i32 = arith.constant 0 : i32
    %c0_i32_0 = arith.constant 0 : i32
    return %arg0, %c0_i32 : i32, i32
  }
}

</mosaic_0001>

<llo_original>
// kernel: tpu_custom_call.1
$region0: #{tpu_custom_call.1}
  #allocation0 [shape = 'u32[]', space=smem, size = 0x4, offset = 0x4, fixed_abs, tag = 'smem constant byte address 0x4 - core index']
  #allocation1 [shape = 'u32[72,128]{1,0:T(1,128)}', space=vmem, size = 0x9000, scoped, tag = 'internal scratch']
  %s0 = inlined_call_operand.hbm [shape: f32[8,128], index: 0, kind: input, shape index: {}]
  %s1 = inlined_call_operand.hbm [shape: f32[1,128], index: 1, kind: input, shape index: {}]
  %s2 = inlined_call_operand.vmem [shape: f32[1,128], index: 2, kind: input, shape index: {}]
  %s3 = inlined_call_operand.hbm [shape: bf16[128,128], index: 3, kind: input, shape index: {}]
  %s4 = inlined_call_operand.vmem [shape: f32[1,128], index: 4, kind: input, shape index: {}]
  %s5 = inlined_call_operand.vmem [shape: f32[1,128], index: 5, kind: input, shape index: {}]
  %s6 = inlined_call_operand.vmem [shape: f32[1,128], index: 6, kind: input, shape index: {}]
  %s7 = inlined_call_operand.hbm [shape: bf16[128,128], index: 7, kind: input, shape index: {}]
  %s8 = inlined_call_operand.vmem [shape: f32[1,128], index: 8, kind: input, shape index: {}]
  %s9 = inlined_call_operand.vmem [shape: f32[1,128], index: 9, kind: input, shape index: {}]
  %s10 = inlined_call_operand.vmem [shape: f32[1,128], index: 10, kind: input, shape index: {}]
  %s11 = inlined_call_operand.hbm [shape: bf16[128,128], index: 11, kind: input, shape index: {}]
  %s12 = inlined_call_operand.vmem [shape: f32[1,128], index: 12, kind: input, shape index: {}]
  %s13 = inlined_call_operand.hbm [shape: f32[8,128], index: 13, kind: output, shape index: {}]
  %s14 = sld [smem:[#allocation0]]
  $region82: #{tpu_custom_call.1} parent=0
    _
  %s16 = ssub.s32 1, %s14
  %s17 = scalar_select 0, %s16, %s14
  $region1: #{tpu_custom_call.1} parent=0
    #allocation2 [shape = 'u8[4096]{0}', space=vmem, size = 0x1000, scoped, tag = 'input window, operand 0, single buffered']
    #allocation3 [shape = 's32[1]{0}', space=sflag, size = 0x4, scoped, tag = 'scoped memory for tpu_custom_call.1']
    #allocation4 [shape = 's32[1]{0}', space=sflag, size = 0x4, scoped, tag = 'scoped memory for tpu_custom_call.1']
    #allocation5 [shape = 'u8[512]{0}', space=vmem, size = 0x400, scoped, tag = 'input window, operand 1, single buffered']
    #allocation6 [shape = 's32[1]{0}', space=sflag, size = 0x4, scoped, tag = 'scoped memory for tpu_custom_call.1']
    #allocation7 [shape = 'u8[32768]{0}', space=vmem, size = 0x8000, scoped, tag = 'input window, operand 3, single buffered']
    #allocation8 [shape = 'u8[32768]{0}', space=vmem, size = 0x8000, scoped, tag = 'input window, operand 7, single buffered']
    #allocation9 [shape = 's32[1]{0}', space=sflag, size = 0x4, scoped, tag = 'scoped memory for tpu_custom_call.1']
    #allocation10 [shape = 'u8[32768]{0}', space=vmem, size = 0x8000, scoped, tag = 'input window, operand 11, single buffered']
    #allocation11 [shape = 'u8[4096]{0}', space=vmem, size = 0x1000, scoped, tag = 'output window, operand 0, single buffered']
    %18 = vsyncpa [#allocation3], 0
    %19 = vsyncpa [#allocation6], 0
    %20 = vsyncpa [#allocation9], 0
    %21 = vsyncpa [#allocation4], 0
    // Predicated region
    $region2: #{tpu_custom_call.1} parent=1 // pred_check
      _
    $region3: #{tpu_custom_call.1} parent=1 // pred_check_branch
      %23 = sbr.rel (0) target = $region5
    $region4: #{tpu_custom_call.1} parent=1 // pred_region
      %25 = vsyncadd [#allocation3], 0
      %s27 = sshll.u32 %s0, 4
      %s28 = int_to_ptr.hbm [resolvable:$true] %s27
      %s29 = sshll.u32 [#allocation2], 4
      %s30 = int_to_ptr.vmem [resolvable:$true] %s29
      %32 = dma.hbm_to_vmem [thread:$0]  %s28, 128, %s30, [#allocation3]
    $region5: #{tpu_custom_call.1} parent=1 // pred_fallthru
      _
    // Predicated region
    $region6: #{tpu_custom_call.1} parent=1 // pred_check
      _
    $region7: #{tpu_custom_call.1} parent=1 // pred_check_branch
      %34 = sbr.rel (0) target = $region9
    $region8: #{tpu_custom_call.1} parent=1 // pred_region
      %36 = vsyncadd [#allocation6], 0
      %s38 = sshll.u32 %s1, 4
      %s39 = int_to_ptr.hbm [resolvable:$true] %s38
      %s40 = sshll.u32 [#allocation5], 4
      %s41 = int_to_ptr.vmem [resolvable:$true] %s40
      %43 = dma.hbm_to_vmem [thread:$0]  %s39, 16, %s41, [#allocation6]
    $region9: #{tpu_custom_call.1} parent=1 // pred_fallthru
      _
    // Predicated region
    $region10: #{tpu_custom_call.1} parent=1 // pred_check
      _
    $region11: #{tpu_custom_call.1} parent=1 // pred_check_branch
      %45 = sbr.rel (0) target = $region13
    $region12: #{tpu_custom_call.1} parent=1 // pred_region
      _
    $region13: #{tpu_custom_call.1} parent=1 // pred_fallthru
      _
    // Predicated region
    $region14: #{tpu_custom_call.1} parent=1 // pred_check
      _
    $region15: #{tpu_custom_call.1} parent=1 // pred_check_branch
      %47 = sbr.rel (0) target = $region17
    $region16: #{tpu_custom_call.1} parent=1 // pred_region
      %49 = vsyncadd [#allocation6], 0
      %s50 = sshll.u32 %s3, 4
      %s51 = int_to_ptr.hbm [resolvable:$true] %s50
      %s52 = sshll.u32 [#allocation7], 4
      %s53 = int_to_ptr.vmem [resolvable:$true] %s52
      %58 = dma.hbm_to_vmem [thread:$0]  %s51, 1024, %s53, [#allocation6], 64, 64, 4
    $region17: #{tpu_custom_call.1} parent=1 // pred_fallthru
      _
    // Predicated region
    $region18: #{tpu_custom_call.1} parent=1 // pred_check
      _
    $region19: #{tpu_custom_call.1} parent=1 // pred_check_branch
      %60 = sbr.rel (0) target = $region21
    $region20: #{tpu_custom_call.1} parent=1 // pred_region
      _
    $region21: #{tpu_custom_call.1} parent=1 // pred_fallthru
      _
    // Predicated region
    $region22: #{tpu_custom_call.1} parent=1 // pred_check
      _
    $region23: #{tpu_custom_call.1} parent=1 // pred_check_branch
      %62 = sbr.rel (0) target = $region25
    $region24: #{tpu_custom_call.1} parent=1 // pred_region
      _
    $region25: #{tpu_custom_call.1} parent=1 // pred_fallthru
      _
    // Predicated region
    $region26: #{tpu_custom_call.1} parent=1 // pred_check
      _
    $region27: #{tpu_custom_call.1} parent=1 // pred_check_branch
      %64 = sbr.rel (0) target = $region29
    $region28: #{tpu_custom_call.1} parent=1 // pred_region
      _
    $region29: #{tpu_custom_call.1} parent=1 // pred_fallthru
      _
    // Predicated region
    $region30: #{tpu_custom_call.1} parent=1 // pred_check
      _
    $region31: #{tpu_custom_call.1} parent=1 // pred_check_branch
      %66 = sbr.rel (0) target = $region33
    $region32: #{tpu_custom_call.1} parent=1 // pred_region
      %68 = vsyncadd [#allocation9], 0
      %s69 = sshll.u32 %s7, 4
      %s70 = int_to_ptr.hbm [resolvable:$true] %s69
      %s71 = sshll.u32 [#allocation8], 4
      %s72 = int_to_ptr.vmem [resolvable:$true] %s71
      %77 = dma.hbm_to_vmem [thread:$0]  %s70, 1024, %s72, [#allocation9], 64, 64, 4
    $region33: #{tpu_custom_call.1} parent=1 // pred_fallthru
      _
    // Predicated region
    $region34: #{tpu_custom_call.1} parent=1 // pred_check
      _
    $region35: #{tpu_custom_call.1} parent=1 // pred_check_branch
      %79 = sbr.rel (0) target = $region37
    $region36: #{tpu_custom_call.1} parent=1 // pred_region
      _
    $region37: #{tpu_custom_call.1} parent=1 // pred_fallthru
      _
    // Predicated region
    $region38: #{tpu_custom_call.1} parent=1 // pred_check
      _
    $region39: #{tpu_custom_call.1} parent=1 // pred_check_branch
      %81 = sbr.rel (0) target = $region41
    $region40: #{tpu_custom_call.1} parent=1 // pred_region
      _
    $region41: #{tpu_custom_call.1} parent=1 // pred_fallthru
      _
    // Predicated region
    $region42: #{tpu_custom_call.1} parent=1 // pred_check
      _
    $region43: #{tpu_custom_call.1} parent=1 // pred_check_branch
      %83 = sbr.rel (0) target = $region45
    $region44: #{tpu_custom_call.1} parent=1 // pred_region
      _
    $region45: #{tpu_custom_call.1} parent=1 // pred_fallthru
      _
    // Predicated region
    $region46: #{tpu_custom_call.1} parent=1 // pred_check
      _
    $region47: #{tpu_custom_call.1} parent=1 // pred_check_branch
      %85 = sbr.rel (0) target = $region49
    $region48: #{tpu_custom_call.1} parent=1 // pred_region
      %87 = vsyncadd [#allocation9], 0
      %s88 = sshll.u32 %s11, 4
      %s89 = int_to_ptr.hbm [resolvable:$true] %s88
      %s90 = sshll.u32 [#allocation10], 4
      %s91 = int_to_ptr.vmem [resolvable:$true] %s90
      %96 = dma.hbm_to_vmem [thread:$0]  %s89, 1024, %s91, [#allocation9], 64, 64, 4
    $region49: #{tpu_custom_call.1} parent=1 // pred_fallthru
      _
    // Predicated region
    $region50: #{tpu_custom_call.1} parent=1 // pred_check
      _
    $region51: #{tpu_custom_call.1} parent=1 // pred_check_branch
      %98 = sbr.rel (0) target = $region53
    $region52: #{tpu_custom_call.1} parent=1 // pred_region
      _
    $region53: #{tpu_custom_call.1} parent=1 // pred_fallthru
      _
    // Predicated region
    $region54: #{tpu_custom_call.1} parent=1 // pred_check
      _
    $region55: #{tpu_custom_call.1} parent=1 // pred_check_branch
      %100 = sbr.rel (0) target = $region57
    $region56: #{tpu_custom_call.1} parent=1 // pred_region
      %102 = dma.done [#allocation3], 128
    $region57: #{tpu_custom_call.1} parent=1 // pred_fallthru
      _
    // Predicated region
    $region58: #{tpu_custom_call.1} parent=1 // pred_check
      _
    $region59: #{tpu_custom_call.1} parent=1 // pred_check_branch
      %104 = sbr.rel (0) target = $region61
    $region60: #{tpu_custom_call.1} parent=1 // pred_region
      %106 = dma.done [#allocation6], 16
    $region61: #{tpu_custom_call.1} parent=1 // pred_fallthru
      _
    // Predicated region
    $region62: #{tpu_custom_call.1} parent=1 // pred_check
      _
    $region63: #{tpu_custom_call.1} parent=1 // pred_check_branch
      %108 = sbr.rel (0) target = $region65
    $region64: #{tpu_custom_call.1} parent=1 // pred_region
      %110 = dma.done [#allocation6], 1024
    $region65: #{tpu_custom_call.1} parent=1 // pred_fallthru
      _
    // Predicated region
    $region66: #{tpu_custom_call.1} parent=1 // pred_check
      _
    $region67: #{tpu_custom_call.1} parent=1 // pred_check_branch
      %112 = sbr.rel (0) target = $region69
    $region68: #{tpu_custom_call.1} parent=1 // pred_region
      %114 = dma.done [#allocation9], 1024
    $region69: #{tpu_custom_call.1} parent=1 // pred_fallthru
      _
    // Predicated region
    $region70: #{tpu_custom_call.1} parent=1 // pred_check
      _
    $region71: #{tpu_custom_call.1} parent=1 // pred_check_branch
      %116 = sbr.rel (0) target = $region73
    $region72: #{tpu_custom_call.1} parent=1 // pred_region
      %118 = dma.done [#allocation9], 1024
    $region73: #{tpu_custom_call.1} parent=1 // pred_fallthru
      _
    %v119 = vld [vmem:[#allocation2] sm:$0xff]
    %v120 = vld [vmem:[#allocation5] sm:$0x1]
    %v121 = vld [vmem:[%s2] sm:$0x1]
    %122 = vadd.xlane.f32.xlu0 %v119
    %v123 = vpop.xlane.xlu0 %122
    %v124 = vmul.f32 %v119, %v119
    %125 = vadd.xlane.f32.xlu0 %v124
    %v126 = vpop.xlane.xlu0 %125
    %v127 = vmul.f32 %v123, 0.03125
    %v128 = vmul.f32 %v126, 0.03125
    %v129 = vmul.f32 %v127, %v127
    %v130 = vsub.f32 %v128, %v129
    %v131 = vsub.f32 %v119, %v127
    %v132 = vadd.f32 %v130, 1e-05
    %v133 = vrsqrt.pop %v132
    %v134 = vmul.f32 %v133, %v132
    %v135 = vmul.f32 %v134, %v133
    %v136 = vmul.f32 0.5, %v135
    %v137 = vsub.f32 1.5, %v136
    %v138 = vmul.f32 %v133, %v137
    %vm139 = vweird.f32 %v132
    %vm140 = vweird.f32 %v133
    %vm141 = vmor %vm139, %vm140
    %v142 = vsel %vm141, %v133, %v138
    %v143 = vmul.f32 %v131, %v142
    %v145 = vperm.slane %v120, 0
    %v147 = vmul.f32 %v143, %v145
    %v149 = vperm.slane %v121, 0
    %v151 = vadd.f32 %v147, %v149
    %v152 = vpack.c.bf16 %v151, %v151
    %v153 = vld [vmem:[#allocation7] sm:$0xf]
    %v154 = vld [vmem:[#allocation7 + $0x4] sm:$0xf]
    %v155 = vld [vmem:[#allocation7 + $0x8] sm:$0xf]
    %v156 = vld [vmem:[#allocation7 + $0xc] sm:$0xf]
    %v157 = vld [vmem:[#allocation7 + $0x10] sm:$0xf]
    %v158 = vld [vmem:[#allocation7 + $0x14] sm:$0xf]
    %v159 = vld [vmem:[#allocation7 + $0x18] sm:$0xf]
    %v160 = vld [vmem:[#allocation7 + $0x1c] sm:$0xf]
    %v161 = vld [vmem:[#allocation7 + $0x20] sm:$0xf]
    %v162 = vld [vmem:[#allocation7 + $0x24] sm:$0xf]
    %v163 = vld [vmem:[#allocation7 + $0x28] sm:$0xf]
    %v164 = vld [vmem:[#allocation7 + $0x2c] sm:$0xf]
    %v165 = vld [vmem:[#allocation7 + $0x30] sm:$0xf]
    %v166 = vld [vmem:[#allocation7 + $0x34] sm:$0xf]
    %v167 = vld [vmem:[#allocation7 + $0x38] sm:$0xf]
    %v168 = vld [vmem:[#allocation7 + $0x3c] sm:$0xf]
    %v169 = vld [vmem:[%s4] sm:$0x1]
    %v171 = vperm.slane %v169, 0
    %v189 = vunpack.c.l.b16 %v153
    %v190 = vunpack.c.l.b16 %v154
    %v191 = vunpack.c.l.b16 %v155
    %v192 = vunpack.c.l.b16 %v156
    %v193 = vunpack.c.l.b16 %v157
    %v194 = vunpack.c.l.b16 %v158
    %v195 = vunpack.c.l.b16 %v159
    %v196 = vunpack.c.l.b16 %v160
    %v197 = vunpack.c.l.b16 %v161
    %v198 = vunpack.c.l.b16 %v162
    %v199 = vunpack.c.l.b16 %v163
    %v200 = vunpack.c.l.b16 %v164
    %v201 = vunpack.c.l.b16 %v165
    %v202 = vunpack.c.l.b16 %v166
    %v203 = vunpack.c.l.b16 %v167
    %v204 = vunpack.c.l.b16 %v168
    %v205 = vpack.c.b16 %v190, %v189
    %v206 = vpack.c.b16 %v192, %v191
    %v207 = vpack.c.b16 %v194, %v193
    %v208 = vpack.c.b16 %v196, %v195
    %v209 = vpack.c.b16 %v198, %v197
    %v210 = vpack.c.b16 %v200, %v199
    %v211 = vpack.c.b16 %v202, %v201
    %v212 = vpack.c.b16 %v204, %v203
    %221 = vmatpush.bf16.msra.mxu0 %v212
    %222 = vmatpush.bf16.msra.mxu0 %v211
    %223 = vmatpush.bf16.msra.mxu0 %v210
    %224 = vmatpush.bf16.msra.mxu0 %v209
    %225 = vmatpush.bf16.msra.mxu0 %v208
    %226 = vmatpush.bf16.msra.mxu0 %v207
    %227 = vmatpush.bf16.msra.mxu0 %v206
    %228 = vmatpush.bf16.msra.mxu0 %v205
    %229 = vmatmul.bf16.gmra.mxu0 %v152
    %v230 = vpop.f32.mrf.mxu0
    %v231 = vadd.f32 %v171, %v230
    %v232 = vpop.f32.mrf.mxu0
    %233 = vdwg.mxu0
    %v234 = vld [vmem:[%s5] sm:$0x1]
    %v235 = vld [vmem:[%s6] sm:$0x1]
    %236 = vadd.xlane.f32.xlu0 %v231
    %v237 = vpop.xlane.xlu0 %236
    %v238 = vmul.f32 %v231, %v231
    %239 = vadd.xlane.f32.xlu0 %v238
    %v240 = vpop.xlane.xlu0 %239
    %v241 = vmul.f32 %v237, 0.015625
    %v242 = vmul.f32 %v240, 0.015625
    %v243 = vmul.f32 %v241, %v241
    %v244 = vsub.f32 %v242, %v243
    %v245 = vsub.f32 %v231, %v241
    %v246 = vadd.f32 %v244, 1e-05
    %v247 = vrsqrt.pop %v246
    %v248 = vmul.f32 %v247, %v246
    %v249 = vmul.f32 %v248, %v247
    %v250 = vmul.f32 0.5, %v249
    %v251 = vsub.f32 1.5, %v250
    %v252 = vmul.f32 %v247, %v251
    %vm253 = vweird.f32 %v246
    %vm254 = vweird.f32 %v247
    %vm255 = vmor %vm253, %vm254
    %v256 = vsel %vm255, %v247, %v252
    %v257 = vmul.f32 %v245, %v256
    %v259 = vperm.slane %v234, 0
    %v261 = vmul.f32 %v257, %v259
    %v263 = vperm.slane %v235, 0
    %v265 = vadd.f32 %v261, %v263
    %v266 = vmax.f32 %v265, 0.0
    %v267 = vpack.c.bf16 %v266, %v266
    %v268 = vld [vmem:[#allocation8] sm:$0xf]
    %v269 = vld [vmem:[#allocation8 + $0x4] sm:$0xf]
    %v270 = vld [vmem:[#allocation8 + $0x8] sm:$0xf]
    %v271 = vld [vmem:[#allocation8 + $0xc] sm:$0xf]
    %v272 = vld [vmem:[#allocation8 + $0x10] sm:$0xf]
    %v273 = vld [vmem:[#allocation8 + $0x14] sm:$0xf]
    %v274 = vld [vmem:[#allocation8 + $0x18] sm:$0xf]
    %v275 = vld [vmem:[#allocation8 + $0x1c] sm:$0xf]
    %v276 = vld [vmem:[#allocation8 + $0x20] sm:$0xf]
    %v277 = vld [vmem:[#allocation8 + $0x24] sm:$0xf]
    %v278 = vld [vmem:[#allocation8 + $0x28] sm:$0xf]
    %v279 = vld [vmem:[#allocation8 + $0x2c] sm:$0xf]
    %v280 = vld [vmem:[#allocation8 + $0x30] sm:$0xf]
    %v281 = vld [vmem:[#allocation8 + $0x34] sm:$0xf]
    %v282 = vld [vmem:[#allocation8 + $0x38] sm:$0xf]
    %v283 = vld [vmem:[#allocation8 + $0x3c] sm:$0xf]
    %v284 = vld [vmem:[%s8] sm:$0x1]
    %v286 = vperm.slane %v284, 0
    %v304 = vunpack.c.l.b16 %v268
    %v305 = vunpack.c.l.b16 %v269
    %v306 = vunpack.c.l.b16 %v270
    %v307 = vunpack.c.l.b16 %v271
    %v308 = vunpack.c.l.b16 %v272
    %v309 = vunpack.c.l.b16 %v273
    %v310 = vunpack.c.l.b16 %v274
    %v311 = vunpack.c.l.b16 %v275
    %v312 = vunpack.c.l.b16 %v276
    %v313 = vunpack.c.l.b16 %v277
    %v314 = vunpack.c.l.b16 %v278
    %v315 = vunpack.c.l.b16 %v279
    %v316 = vunpack.c.l.b16 %v280
    %v317 = vunpack.c.l.b16 %v281
    %v318 = vunpack.c.l.b16 %v282
    %v319 = vunpack.c.l.b16 %v283
    %v320 = vpack.c.b16 %v305, %v304
    %v321 = vpack.c.b16 %v307, %v306
    %v322 = vpack.c.b16 %v309, %v308
    %v323 = vpack.c.b16 %v311, %v310
    %v324 = vpack.c.b16 %v313, %v312
    %v325 = vpack.c.b16 %v315, %v314
    %v326 = vpack.c.b16 %v317, %v316
    %v327 = vpack.c.b16 %v319, %v318
    %336 = vmatpush.bf16.msra.mxu0 %v327
    %337 = vmatpush.bf16.msra.mxu0 %v326
    %338 = vmatpush.bf16.msra.mxu0 %v325
    %339 = vmatpush.bf16.msra.mxu0 %v324
    %340 = vmatpush.bf16.msra.mxu0 %v323
    %341 = vmatpush.bf16.msra.mxu0 %v322
    %342 = vmatpush.bf16.msra.mxu0 %v321
    %343 = vmatpush.bf16.msra.mxu0 %v320
    %344 = vmatmul.bf16.gmra.mxu0 %v267
    %v345 = vpop.f32.mrf.mxu0
    %v346 = vadd.f32 %v286, %v345
    %v347 = vpop.f32.mrf.mxu0
    %348 = vdwg.mxu0
    %v349 = vld [vmem:[%s9] sm:$0x1]
    %v350 = vld [vmem:[%s10] sm:$0x1]
    %351 = vadd.xlane.f32.xlu0 %v346
    %v352 = vpop.xlane.xlu0 %351
    %v353 = vmul.f32 %v346, %v346
    %354 = vadd.xlane.f32.xlu0 %v353
    %v355 = vpop.xlane.xlu0 %354
    %v356 = vmul.f32 %v352, 0.020833334
    %v357 = vmul.f32 %v355, 0.020833334
    %v358 = vmul.f32 %v356, %v356
    %v359 = vsub.f32 %v357, %v358
    %v360 = vsub.f32 %v346, %v356
    %v361 = vadd.f32 %v359, 1e-05
    %v362 = vrsqrt.pop %v361
    %v363 = vmul.f32 %v362, %v361
    %v364 = vmul.f32 %v363, %v362
    %v365 = vmul.f32 0.5, %v364
    %v366 = vsub.f32 1.5, %v365
    %v367 = vmul.f32 %v362, %v366
    %vm368 = vweird.f32 %v361
    %vm369 = vweird.f32 %v362
    %vm370 = vmor %vm368, %vm369
    %v371 = vsel %vm370, %v362, %v367
    %v372 = vmul.f32 %v360, %v371
    %v374 = vperm.slane %v349, 0
    %v376 = vmul.f32 %v372, %v374
    %v378 = vperm.slane %v350, 0
    %v380 = vadd.f32 %v376, %v378
    %v381 = vmax.f32 %v380, 0.0
    %v382 = vpack.c.bf16 %v381, %v381
    %v383 = vld [vmem:[#allocation10] sm:$0xf]
    %v384 = vld [vmem:[#allocation10 + $0x4] sm:$0xf]
    %v385 = vld [vmem:[#allocation10 + $0x8] sm:$0xf]
    %v386 = vld [vmem:[#allocation10 + $0xc] sm:$0xf]
    %v387 = vld [vmem:[#allocation10 + $0x10] sm:$0xf]
    %v388 = vld [vmem:[#allocation10 + $0x14] sm:$0xf]
    %v389 = vld [vmem:[#allocation10 + $0x18] sm:$0xf]
    %v390 = vld [vmem:[#allocation10 + $0x1c] sm:$0xf]
    %v391 = vld [vmem:[#allocation10 + $0x20] sm:$0xf]
    %v392 = vld [vmem:[#allocation10 + $0x24] sm:$0xf]
    %v393 = vld [vmem:[#allocation10 + $0x28] sm:$0xf]
    %v394 = vld [vmem:[#allocation10 + $0x2c] sm:$0xf]
    %v395 = vld [vmem:[#allocation10 + $0x30] sm:$0xf]
    %v396 = vld [vmem:[#allocation10 + $0x34] sm:$0xf]
    %v397 = vld [vmem:[#allocation10 + $0x38] sm:$0xf]
    %v398 = vld [vmem:[#allocation10 + $0x3c] sm:$0xf]
    %v399 = vld [vmem:[%s12] sm:$0x1]
    %v401 = vperm.slane %v399, 0
    %v419 = vunpack.c.l.b16 %v383
    %v420 = vunpack.c.l.b16 %v384
    %v421 = vunpack.c.l.b16 %v385
    %v422 = vunpack.c.l.b16 %v386
    %v423 = vunpack.c.l.b16 %v387
    %v424 = vunpack.c.l.b16 %v388
    %v425 = vunpack.c.l.b16 %v389
    %v426 = vunpack.c.l.b16 %v390
    %v427 = vunpack.c.l.b16 %v391
    %v428 = vunpack.c.l.b16 %v392
    %v429 = vunpack.c.l.b16 %v393
    %v430 = vunpack.c.l.b16 %v394
    %v431 = vunpack.c.l.b16 %v395
    %v432 = vunpack.c.l.b16 %v396
    %v433 = vunpack.c.l.b16 %v397
    %v434 = vunpack.c.l.b16 %v398
    %v435 = vpack.c.b16 %v420, %v419
    %v436 = vpack.c.b16 %v422, %v421
    %v437 = vpack.c.b16 %v424, %v423
    %v438 = vpack.c.b16 %v426, %v425
    %v439 = vpack.c.b16 %v428, %v427
    %v440 = vpack.c.b16 %v430, %v429
    %v441 = vpack.c.b16 %v432, %v431
    %v442 = vpack.c.b16 %v434, %v433
    %451 = vmatpush.bf16.msra.mxu0 %v442
    %452 = vmatpush.bf16.msra.mxu0 %v441
    %453 = vmatpush.bf16.msra.mxu0 %v440
    %454 = vmatpush.bf16.msra.mxu0 %v439
    %455 = vmatpush.bf16.msra.mxu0 %v438
    %456 = vmatpush.bf16.msra.mxu0 %v437
    %457 = vmatpush.bf16.msra.mxu0 %v436
    %458 = vmatpush.bf16.msra.mxu0 %v435
    %459 = vmatmul.bf16.gmra.mxu0 %v382
    %v460 = vpop.f32.mrf.mxu0
    %v461 = vadd.f32 %v401, %v460
    %v462 = vpop.f32.mrf.mxu0
    %463 = vdwg.mxu0
    %464 = vst [vmem:[#allocation11] sm:$0xff] %v461
    // Predicated region
    $region74: #{tpu_custom_call.1} parent=1 // pred_check
      _
    $region75: #{tpu_custom_call.1} parent=1 // pred_check_branch
      %466 = sbr.rel (0) target = $region77
    $region76: #{tpu_custom_call.1} parent=1 // pred_region
      %468 = vsyncadd [#allocation4], 0
      %s470 = sshll.u32 [#allocation11], 4
      %s471 = int_to_ptr.vmem [resolvable:$true] %s470
      %s472 = sshll.u32 %s13, 4
      %s473 = int_to_ptr.hbm [resolvable:$true] %s472
      %475 = dma.vmem_to_hbm [thread:$0]  %s471, 128, %s473, [#allocation4]
    $region77: #{tpu_custom_call.1} parent=1 // pred_fallthru
      _
    // Predicated region
    $region78: #{tpu_custom_call.1} parent=1 // pred_check
      _
    $region79: #{tpu_custom_call.1} parent=1 // pred_check_branch
      %477 = sbr.rel (0) target = $region81
    $region80: #{tpu_custom_call.1} parent=1 // pred_region
      %479 = dma.done [#allocation4], 128
    $region81: #{tpu_custom_call.1} parent=1 // pred_fallthru
      _
    %480 = vsyncpa [#allocation3], 1
    %481 = vsyncpa [#allocation6], 1
    %482 = vsyncpa [#allocation9], 1
    %483 = vsyncpa [#allocation4], 1

</llo_original>
